<compile_context>
chip_gen: v7x
topology: tpu7x:2x2x1
jax: 0.10.0
libtpu: 0.0.40
codegen_flags: <defaults>
</compile_context>

<pallas_src>
import functools

import jax
import jax.numpy as jnp
from jax.experimental import pallas as pl
from jax.experimental.pallas import tpu as pltpu

_LANE = 128
_MXU_MIN_C = 32


def _ipg_kernel(x_ref, w_ref, b_ref, out_ref, gt_ref, *, use_mxu):
    # x_ref  : (1, C, T) VMEM            current (batch, hw-tile) block
    # w_ref  : (C, 1) or (1, C) VMEM f32 conv weight (out_channels = 1)
    # b_ref  : (1,)  SMEM f32            conv bias
    # out_ref: (1, C, T) VMEM
    # gt_ref : (1, 1, T) VMEM
    x = x_ref[0]                                            # (C, T), input dtype

    if use_mxu:
        # (1, C) @ (C, T) on the otherwise-idle MXU, f32 accumulation.
        gt = jnp.dot(w_ref[...], x.astype(jnp.float32),
                     preferred_element_type=jnp.float32)
    else:
        # Full-vreg multiply by the (C, 1) weight column + sublane (XLU) reduce.
        gt = jnp.sum(x.astype(jnp.float32) * w_ref[...], axis=0, keepdims=True)
    gt = gt + b_ref[0]                                      # (1, T) f32

    gt_ref[0] = gt.astype(gt_ref.dtype)

    # x + x * sigmoid(gt) == x * (1 + sigmoid(gt)); gate is computed in f32
    # (EUP), the final elementwise multiply stays in the input dtype so bf16
    # inputs use the bf16 VALUs on v6e/v7x and halve the largest intermediate.
    gate = (1.0 + jax.nn.sigmoid(gt)).astype(x.dtype)       # (1, T)
    out_ref[0] = x * gate


def _pick_hw_tile(HW, C, x_itemsize, B):
    """Largest lane-dense HW tile within an explicit VMEM working-set budget."""
    # Target ~2 MiB of x per block (measured HBM-roofline plateau for blocks).
    target_x_bytes = 2 * 1024 * 1024
    tile_from_target = target_x_bytes // max(1, C * x_itemsize)

    # Working-set budget: double-buffered x/out/gt blocks plus ~4x the x-block
    # of whole-block f32 intermediates materialized inside the kernel.
    vmem_budget = 28 * 1024 * 1024
    per_lane = 2 * (2 * C * x_itemsize + 4) + 4 * C * 4 + 8
    tile_from_vmem = vmem_budget // per_lane

    tile = min(tile_from_target, tile_from_vmem)
    tile = max(_LANE, (tile // _LANE) * _LANE)

    if tile >= HW:
        tile = HW                      # single full-row tile (always legal)

    # Guarantee >= 2 grid steps (v7x has 2 TensorCores; also enables overlap).
    while B * pl.cdiv(HW, tile) < 2 and tile > _LANE:
        new_tile = max(_LANE, (tile // 2 // _LANE) * _LANE)
        if new_tile == tile:
            break
        tile = new_tile

    # Prefer a tile that divides HW exactly (no ragged last block), but only
    # if that doesn't shrink the tile by more than ~2x.
    if _LANE < tile < HW and HW % _LANE == 0 and tile % _LANE == 0:
        snapped = tile
        while snapped > _LANE and HW % snapped:
            snapped -= _LANE
        if HW % snapped == 0 and snapped >= tile // 2:
            tile = snapped
    return tile


def image_prediction_generator(x, weight, bias):
    """x: (B, C, H, W); weight: (1, C, 1, 1); bias: (1,).

    Returns (x_out, gt_pre) matching the PyTorch module's forward.
    """
    B, C, H, W = x.shape
    HW = H * W

    hw_tile = _pick_hw_tile(HW, C, jnp.dtype(x.dtype).itemsize, B)
    grid_hw = pl.cdiv(HW, hw_tile)

    # No host-side padding: if hw_tile does not divide HW exactly, Pallas
    # handles the ragged last block (OOB input lanes are garbage but only ever
    # produce values in dropped OOB output columns).
    x_flat = x.reshape(B, C, HW)

    use_mxu = C >= _MXU_MIN_C
    if use_mxu:
        w2d = weight.reshape(1, C).astype(jnp.float32)
        w_spec = pl.BlockSpec((1, C), lambda b, t: (0, 0))
    else:
        w2d = weight.reshape(C, 1).astype(jnp.float32)
        w_spec = pl.BlockSpec((C, 1), lambda b, t: (0, 0))
    b1d = bias.reshape(1).astype(jnp.float32)

    out_flat, gt_flat = pl.pallas_call(
        functools.partial(_ipg_kernel, use_mxu=use_mxu),
        out_shape=(
            jax.ShapeDtypeStruct((B, C, HW), x.dtype),
            jax.ShapeDtypeStruct((B, 1, HW), x.dtype),
        ),
        grid_spec=pltpu.PrefetchScalarGridSpec(
            num_scalar_prefetch=0,
            grid=(B, grid_hw),
            in_specs=[
                pl.BlockSpec((1, C, hw_tile), lambda b, t: (b, 0, t)),
                w_spec,                                               # weight (VMEM)
                pl.BlockSpec(memory_space=pltpu.MemorySpace.SMEM),    # bias
            ],
            out_specs=[
                pl.BlockSpec((1, C, hw_tile), lambda b, t: (b, 0, t)),
                pl.BlockSpec((1, 1, hw_tile), lambda b, t: (b, 0, t)),
            ],
        ),
        compiler_params=pltpu.CompilerParams(
            dimension_semantics=("parallel", "parallel"),
            vmem_limit_bytes=48 * 1024 * 1024,
        ),
    )(x_flat, w2d, b1d)

    x_out = out_flat.reshape(B, C, H, W)
    gt_pre = gt_flat.reshape(B, 1, H, W)
    return x_out, gt_pre


if __name__ == "__main__":
    key = jax.random.PRNGKey(0)
    kx, kw, kb = jax.random.split(key, 3)

    B, C, H, W = 2, 4, 16, 16
    x = jax.random.normal(kx, (B, C, H, W), dtype=jnp.float32)

    # Conv2d(in_channels=C, out_channels=1, kernel_size=1) shaped params.
    bound = 1.0 / (C ** 0.5)
    weight = jax.random.uniform(kw, (1, C, 1, 1), jnp.float32, -bound, bound)
    bias = jax.random.uniform(kb, (1,), jnp.float32, -bound, bound)

    x_out, gt_pre = image_prediction_generator(x, weight, bias)
    jax.block_until_ready((x_out, gt_pre))

    # Reference check in plain JAX (same math as the PyTorch forward).
    gt_ref = (jnp.einsum("bchw,oc->bohw", x, weight.reshape(1, C))
              + bias.reshape(1, 1, 1, 1))
    x_ref = x + x * jax.nn.sigmoid(gt_ref)
    assert gt_pre.shape == (B, 1, H, W) and x_out.shape == (B, C, H, W)
    assert jnp.allclose(gt_pre, gt_ref, atol=1e-5, rtol=1e-5)
    assert jnp.allclose(x_out, x_ref, atol=1e-5, rtol=1e-5)

    print("KERNEL_OK")
</pallas_src>

<mosaic_0001>
module attributes {stable_mosaic.version = 11 : i64} {
  func.func @_ipg_kernel(%arg0: i32, %arg1: i32, %arg2: memref<1x4x256xf32, #tpu.memory_space<vmem>>, %arg3: memref<4x1xf32, #tpu.memory_space<vmem>>, %arg4: memref<1xf32, #tpu.memory_space<smem>>, %arg5: memref<1x4x256xf32, #tpu.memory_space<vmem>>, %arg6: memref<1x1x256xf32, #tpu.memory_space<vmem>>) attributes {dimension_semantics = [#tpu.dimension_semantics<parallel>, #tpu.dimension_semantics<parallel>], iteration_bounds = array<i64: 2, 1>, scalar_prefetch = 0 : i64, scratch_operands = 0 : i64, tpu.core_type = #tpu.core_type<tc>, window_params = [{transform_indices = @transform_0, window_bounds = array<i64: 1, 4, 256>}, {pipeline_mode = #tpu.pipeline_mode<synchronous>, transform_indices = @transform_1, window_bounds = array<i64: 4, 1>}, {transform_indices = @transform_2, window_bounds = array<i64: 1>}, {transform_indices = @transform_3, window_bounds = array<i64: 1, 4, 256>}, {transform_indices = @transform_4, window_bounds = array<i64: 1, 1, 256>}]} {
    %c0 = arith.constant 0 : index
    %c0_0 = arith.constant 0 : index
    %c0_1 = arith.constant 0 : index
    %0 = vector.load %arg2[%c0, %c0_0, %c0_1] : memref<1x4x256xf32, #tpu.memory_space<vmem>>, vector<1x4x256xf32>
    %1 = vector.shape_cast %0 : vector<1x4x256xf32> to vector<4x256xf32>
    %c0_2 = arith.constant 0 : index
    %c0_3 = arith.constant 0 : index
    %2 = vector.load %arg3[%c0_2, %c0_3] : memref<4x1xf32, #tpu.memory_space<vmem>>, vector<4x1xf32>
    %3 = vector.broadcast %2 : vector<4x1xf32> to vector<4x256xf32>
    %4 = arith.mulf %1, %3 : vector<4x256xf32>
    %cst = arith.constant dense<0.000000e+00> : vector<256xf32>
    %5 = vector.multi_reduction <add>, %4, %cst [0] : vector<4x256xf32> to vector<256xf32>
    %6 = vector.shape_cast %5 : vector<256xf32> to vector<1x256xf32>
    %c0_4 = arith.constant 0 : index
    %7 = memref.load %arg4[%c0_4] : memref<1xf32, #tpu.memory_space<smem>>
    %8 = vector.broadcast %7 : f32 to vector<1x256xf32>
    %9 = arith.addf %6, %8 : vector<1x256xf32>
    %c0_5 = arith.constant 0 : index
    %c0_6 = arith.constant 0 : index
    %c0_7 = arith.constant 0 : index
    %10 = vector.load %arg6[%c0_5, %c0_6, %c0_7] : memref<1x1x256xf32, #tpu.memory_space<vmem>>, vector<1x1x256xf32>
    %11 = vector.shape_cast %10 : vector<1x1x256xf32> to vector<1x256xf32>
    %12 = vector.shape_cast %9 : vector<1x256xf32> to vector<1x1x256xf32>
    tpu.vector_store %arg6[%c0_5, %c0_6, %c0_7], %12 {strides = array<i32>} : memref<1x1x256xf32, #tpu.memory_space<vmem>>, vector<1x1x256xf32>,
    %13 = arith.negf %9 : vector<1x256xf32>
    %14 = math.exp %13 : vector<1x256xf32>
    %cst_8 = arith.constant 1.000000e+00 : f32
    %15 = vector.broadcast %cst_8 : f32 to vector<1x256xf32>
    %16 = arith.addf %15, %14 : vector<1x256xf32>
    %17 = arith.divf %15, %16 : vector<1x256xf32>
    %cst_9 = arith.constant 1.000000e+00 : f32
    %18 = vector.broadcast %cst_9 : f32 to vector<1x256xf32>
    %19 = arith.addf %18, %17 : vector<1x256xf32>
    %20 = vector.broadcast %19 : vector<1x256xf32> to vector<4x256xf32>
    %21 = arith.mulf %1, %20 : vector<4x256xf32>
    %c0_10 = arith.constant 0 : index
    %c0_11 = arith.constant 0 : index
    %c0_12 = arith.constant 0 : index
    %22 = vector.load %arg5[%c0_10, %c0_11, %c0_12] : memref<1x4x256xf32, #tpu.memory_space<vmem>>, vector<1x4x256xf32>
    %23 = vector.shape_cast %22 : vector<1x4x256xf32> to vector<4x256xf32>
    %24 = vector.shape_cast %21 : vector<4x256xf32> to vector<1x4x256xf32>
    tpu.vector_store %arg5[%c0_10, %c0_11, %c0_12], %24 {strides = array<i32>} : memref<1x4x256xf32, #tpu.memory_space<vmem>>, vector<1x4x256xf32>,
    return
  }
  func.func @transform_0(%arg0: i32, %arg1: i32) -> (i32, i32, i32) {
    %c0_i32 = arith.constant 0 : i32
    %c0_i32_0 = arith.constant 0 : i32
    return %arg0, %c0_i32, %arg1 : i32, i32, i32
  }
  func.func @transform_1(%arg0: i32, %arg1: i32) -> (i32, i32) {
    %c0_i32 = arith.constant 0 : i32
    %c0_i32_0 = arith.constant 0 : i32
    %c0_i32_1 = arith.constant 0 : i32
    return %c0_i32, %c0_i32_0 : i32, i32
  }
  func.func @transform_2(%arg0: i32, %arg1: i32) -> i32 {
    %c0_i32 = arith.constant 0 : i32
    %c0_i32_0 = arith.constant 0 : i32
    return %c0_i32 : i32
  }
  func.func @transform_3(%arg0: i32, %arg1: i32) -> (i32, i32, i32) {
    %c0_i32 = arith.constant 0 : i32
    %c0_i32_0 = arith.constant 0 : i32
    return %arg0, %c0_i32, %arg1 : i32, i32, i32
  }
  func.func @transform_4(%arg0: i32, %arg1: i32) -> (i32, i32, i32) {
    %c0_i32 = arith.constant 0 : i32
    %c0_i32_0 = arith.constant 0 : i32
    return %arg0, %c0_i32, %arg1 : i32, i32, i32
  }
}

</mosaic_0001>

<llo_original>
// kernel: tpu_custom_call.1
$region0: #{tpu_custom_call.1}
  #allocation0 [shape = 'u32[]', space=smem, size = 0x4, offset = 0x4, fixed_abs, tag = 'smem constant byte address 0x4 - core index']
  #allocation1 [shape = 'u32[144,128]{1,0:T(1,128)}', space=vmem, size = 0x12000, scoped, tag = 'internal scratch']
  #allocation2 [shape = 'f32[1]{0:T(128)S(6)}', space=smem, size = 0x200, scoped, tag = 'scoped memory for tpu_custom_call.1']
  %s0 = inlined_call_operand.hbm [shape: f32[2,4,256], index: 0, kind: input, shape index: {}]
  %s1 = inlined_call_operand.vmem [shape: f32[4,1], index: 1, kind: input, shape index: {}]
  %s2 = inlined_call_operand.<no memory space> [shape: f32[1], index: 2, kind: input, shape index: {}]
  %s3 = inlined_call_operand.hbm [shape: f32[2,4,256], index: 3, kind: output, shape index: {0}]
  %s4 = inlined_call_operand.hbm [shape: f32[2,1,256], index: 4, kind: output, shape index: {1}]
  %5 = xla_tuple %s3, %s4
  %s6 = sld [smem:[#allocation0]]
  $region57: #{tpu_custom_call.1} parent=0
    _
  %s8 = ssub.s32 1, %s6
  %s9 = scalar_select 0, %s8, %s6
  %10 = sst [smem:[#allocation2]] %s2
  $region1: #{tpu_custom_call.1} parent=0
    #allocation3 [shape = 'u8[8192]{0}', space=vmem, size = 0x2000, scoped, tag = 'input window, operand 0']
    #allocation4 [shape = 's32[2]{0}', space=sflag, size = 0x8, scoped, tag = 'scoped memory for tpu_custom_call.1']
    #allocation5 [shape = 's32[2]{0}', space=sflag, size = 0x8, scoped, tag = 'scoped memory for tpu_custom_call.1']
    #allocation6 [shape = 'u8[8192]{0}', space=vmem, size = 0x2000, scoped, tag = 'output window, operand 0']
    #allocation7 [shape = 'u8[2048]{0}', space=vmem, size = 0x800, scoped, tag = 'output window, operand 1']
    #allocation8 [shape = 's32[2]{0}', space=sflag, size = 0x8, scoped, tag = 'scoped memory for tpu_custom_call.1']
    %11 = vsyncpa [#allocation4], 0
    %s12 = scalar_lea.sflag [#allocation4], 1
    %13 = vsyncpa %s12, 0
    %14 = vsyncpa [#allocation5], 0
    %s15 = scalar_lea.sflag [#allocation5], 1
    %16 = vsyncpa %s15, 0
    %17 = vsyncpa [#allocation8], 0
    %s18 = scalar_lea.sflag [#allocation8], 1
    %19 = vsyncpa %s18, 0
    loop: start=0, step=1, limit=4
    $region2: #{tpu_custom_call.1} parent=1 // loop_pre_header
      _
    $region3: #{tpu_custom_call.1} parent=1 // loop_header
      %s21 = sphi 0, %s25
      %p22 = scmp.ge.s32.totalorder %s21, 4
      %s28 = sphi 0, %s40
      %s29 = sphi 0, %s36
      %s30 = sphi 0, %s28
      %s31 = sphi 0, %s29
      %s32 = sphi 0, %s30
      %s33 = sphi 0, %s31
      %s45 = sphi 0, %s47
      %s48 = sphi 0, %s45
      %s49 = sphi 0, %s48
      %s65 = sphi 0, %s49
      %s69 = sphi 0, %s69
      %s71 = sphi 0, %s69
      %s72 = sphi 0, %s71
      %s86 = sphi 0, %s72
      %s90 = sphi 0, %s90
      %s92 = sphi 0, %s90
      %s93 = sphi 0, %s92
      %s107 = sphi 0, %s93
      %s115 = sphi 0, %s117
      %s118 = sphi 0, %s115
      %s119 = sphi 0, %s118
      %s135 = sphi 0, %s119
      %s143 = sphi 0, %s145
      %s146 = sphi 0, %s143
      %s147 = sphi 0, %s146
      %s163 = sphi 0, %s147
    $region4: #{tpu_custom_call.1} parent=1 // loop_header_branch
      %24 = sbr.rel (%p22) target = $region8
    $region5: #{tpu_custom_call.1} parent=1 // loop_body
      %s26 = ssub.s32 %s21, 1
      %s27 = ssub.s32 %s21, 2
      %s34 = sadd.s32 1, %s29
      %p35 = scmp.ge.s32.totalorder %s34, 1
      %s36 = scalar_select %p35, 0, %s34
      %s37 = sadd.s32 1, %s28
      %s38 = scalar_select %p35, %s37, %s28
      %p39 = scmp.ge.s32.totalorder %s38, 2
      %s40 = scalar_select %p39, 0, %s38
      %s41 = ssub.s32 %s28, %s40
      %s42 = ssub.s32 %s29, %s36
      %s43 = sor.u32 %s41, %s42
      %p44 = scmp.eq.s32.totalorder %s43, 0
      %s46 = sadd.s32 %s45, 1
      %s47 = scalar_select %p44, %s45, %s46
      %p50 = pneg %p44
      %p51 = scmp.eq.s32.totalorder %s21, 1
      %p52 = por %p50, %p51
      %p53 = scmp.ne.s32.totalorder %s45, %s48
      %p54 = scmp.eq.s32.totalorder %s21, 0
      %p55 = por %p53, %p54
      %p56 = scmp.ne.s32.totalorder %s45, %s48
      %p57 = scmp.eq.s32.totalorder %s26, 1
      %p58 = por %p56, %p57
      %p59 = scmp.ne.s32.totalorder %s48, %s49
      %p60 = scmp.eq.s32.totalorder %s26, 0
      %p61 = por %p59, %p60
      %p62 = scmp.ne.s32.totalorder %s48, %s49
      %p63 = scmp.eq.s32.totalorder %s27, 1
      %p64 = por %p62, %p63
      %p66 = scmp.ne.s32.totalorder %s49, %s65
      %p67 = scmp.eq.s32.totalorder %s27, 0
      %p68 = por %p66, %p67
      %s70 = sadd.s32 %s69, 1
      %p73 = scmp.eq.s32.totalorder %s21, 1
      %p74 = scmp.ne.s32.totalorder %s69, %s71
      %p75 = scmp.eq.s32.totalorder %s21, 0
      %p76 = por %p74, %p75
      %p77 = scmp.ne.s32.totalorder %s69, %s71
      %p78 = scmp.eq.s32.totalorder %s26, 1
      %p79 = por %p77, %p78
      %p80 = scmp.ne.s32.totalorder %s71, %s72
      %p81 = scmp.eq.s32.totalorder %s26, 0
      %p82 = por %p80, %p81
      %p83 = scmp.ne.s32.totalorder %s71, %s72
      %p84 = scmp.eq.s32.totalorder %s27, 1
      %p85 = por %p83, %p84
      %p87 = scmp.ne.s32.totalorder %s72, %s86
      %p88 = scmp.eq.s32.totalorder %s27, 0
      %p89 = por %p87, %p88
      %s91 = sadd.s32 %s90, 1
      %p94 = scmp.eq.s32.totalorder %s21, 1
      %p95 = scmp.ne.s32.totalorder %s90, %s92
      %p96 = scmp.eq.s32.totalorder %s21, 0
      %p97 = por %p95, %p96
      %p98 = scmp.ne.s32.totalorder %s90, %s92
      %p99 = scmp.eq.s32.totalorder %s26, 1
      %p100 = por %p98, %p99
      %p101 = scmp.ne.s32.totalorder %s92, %s93
      %p102 = scmp.eq.s32.totalorder %s26, 0
      %p103 = por %p101, %p102
      %p104 = scmp.ne.s32.totalorder %s92, %s93
      %p105 = scmp.eq.s32.totalorder %s27, 1
      %p106 = por %p104, %p105
      %p108 = scmp.ne.s32.totalorder %s93, %s107
      %p109 = scmp.eq.s32.totalorder %s27, 0
      %p110 = por %p108, %p109
      %s111 = ssub.s32 %s28, %s40
      %s112 = ssub.s32 %s29, %s36
      %s113 = sor.u32 %s111, %s112
      %p114 = scmp.eq.s32.totalorder %s113, 0
      %s116 = sadd.s32 %s115, 1
      %s117 = scalar_select %p114, %s115, %s116
      %p120 = pneg %p114
      %p121 = scmp.eq.s32.totalorder %s21, 1
      %p122 = por %p120, %p121
      %p123 = scmp.ne.s32.totalorder %s115, %s118
      %p124 = scmp.eq.s32.totalorder %s21, 0
      %p125 = por %p123, %p124
      %p126 = scmp.ne.s32.totalorder %s115, %s118
      %p127 = scmp.eq.s32.totalorder %s26, 1
      %p128 = por %p126, %p127
      %p129 = scmp.ne.s32.totalorder %s118, %s119
      %p130 = scmp.eq.s32.totalorder %s26, 0
      %p131 = por %p129, %p130
      %p132 = scmp.ne.s32.totalorder %s118, %s119
      %p133 = scmp.eq.s32.totalorder %s27, 1
      %p134 = por %p132, %p133
      %p136 = scmp.ne.s32.totalorder %s119, %s135
      %p137 = scmp.eq.s32.totalorder %s27, 0
      %p138 = por %p136, %p137
      %s139 = ssub.s32 %s28, %s40
      %s140 = ssub.s32 %s29, %s36
      %s141 = sor.u32 %s139, %s140
      %p142 = scmp.eq.s32.totalorder %s141, 0
      %s144 = sadd.s32 %s143, 1
      %s145 = scalar_select %p142, %s143, %s144
      %p148 = pneg %p142
      %p149 = scmp.eq.s32.totalorder %s21, 1
      %p150 = por %p148, %p149
      %p151 = scmp.ne.s32.totalorder %s143, %s146
      %p152 = scmp.eq.s32.totalorder %s21, 0
      %p153 = por %p151, %p152
      %p154 = scmp.ne.s32.totalorder %s143, %s146
      %p155 = scmp.eq.s32.totalorder %s26, 1
      %p156 = por %p154, %p155
      %p157 = scmp.ne.s32.totalorder %s146, %s147
      %p158 = scmp.eq.s32.totalorder %s26, 0
      %p159 = por %p157, %p158
      %p160 = scmp.ne.s32.totalorder %s146, %s147
      %p161 = scmp.eq.s32.totalorder %s27, 1
      %p162 = por %p160, %p161
      %p164 = scmp.ne.s32.totalorder %s147, %s163
      %p165 = scmp.eq.s32.totalorder %s27, 0
      %p166 = por %p164, %p165
      %p167 = scmp.le.s32.totalorder 1, %s21
      %p168 = scmp.lt.s32.totalorder %s21, 3
      %p169 = pnand %p167, %p168
      %p170 = pneg %p169
      // Predicated region
      $region9: #{tpu_custom_call.1} parent=5 // pred_check
        _
      $region10: #{tpu_custom_call.1} parent=5 // pred_check_branch
        %172 = sbr.rel (%p169) target = $region12
      $region11: #{tpu_custom_call.1} parent=5 // pred_region
        %s173 = ssub.s32 %s21, 1
        // Predicated region
        $region13: #{tpu_custom_call.1} parent=11 // pred_check
          %p174 = pneg %p82
        $region14: #{tpu_custom_call.1} parent=11 // pred_check_branch
          %176 = sbr.rel (%p174) target = $region16
        $region15: #{tpu_custom_call.1} parent=11 // pred_region
          _
        $region16: #{tpu_custom_call.1} parent=11 // pred_fallthru
          _
        // Predicated region
        $region17: #{tpu_custom_call.1} parent=11 // pred_check
          %p177 = pneg %p103
        $region18: #{tpu_custom_call.1} parent=11 // pred_check_branch
          %179 = sbr.rel (%p177) target = $region20
        $region19: #{tpu_custom_call.1} parent=11 // pred_region
          _
        $region20: #{tpu_custom_call.1} parent=11 // pred_fallthru
          _
      $region12: #{tpu_custom_call.1} parent=5 // pred_fallthru
        _
      %p180 = scmp.lt.s32.totalorder %s21, 2
      // Predicated region
      $region21: #{tpu_custom_call.1} parent=5 // pred_check
        %p181 = pneg %p180
      $region22: #{tpu_custom_call.1} parent=5 // pred_check_branch
        %183 = sbr.rel (%p181) target = $region24
      $region23: #{tpu_custom_call.1} parent=5 // pred_region
        // Predicated region
        $region25: #{tpu_custom_call.1} parent=23 // pred_check
          %p184 = pneg %p55
        $region26: #{tpu_custom_call.1} parent=23 // pred_check_branch
          %186 = sbr.rel (%p184) target = $region28
        $region27: #{tpu_custom_call.1} parent=23 // pred_region
          %s187 = sand.u32 %s45, 1
          %s188 = scalar_lea.sflag [#allocation4], %s187
          %s189 = sand.u32 %s45, 1
          %s190 = smul.addr %s189, 8
          %s191 = scalar_lea.vmem [#allocation3], %s190
          %s192 = smul.u32 2, %s29
          %s194 = ssub.s32 128, 128
          %195 = vsyncadd %s188, %s194
          %s196 = smul.addr %s28, 2
          %s197 = sadd.s32 %s192, %s196
          %s198 = smul.addr %s197, 64
          %s199 = scalar_lea.hbm %s0, %s198
          %s201 = sshll.u32 %s191, 4
          %s202 = int_to_ptr.vmem [resolvable:$true] %s201
          %204 = dma.hbm_to_vmem [thread:$0]  %s199, 128, %s202, %s188
        $region28: #{tpu_custom_call.1} parent=23 // pred_fallthru
          _
      $region24: #{tpu_custom_call.1} parent=5 // pred_fallthru
        _
      %p205 = scmp.le.s32.totalorder 1, %s21
      %p206 = scmp.lt.s32.totalorder %s21, 3
      %p207 = pnand %p205, %p206
      %p208 = pneg %p207
      // Predicated region
      $region29: #{tpu_custom_call.1} parent=5 // pred_check
        _
      $region30: #{tpu_custom_call.1} parent=5 // pred_check_branch
        %210 = sbr.rel (%p207) target = $region32
      $region31: #{tpu_custom_call.1} parent=5 // pred_region
        %s211 = ssub.s32 %s21, 1
        %s212 = sand.u32 %s48, 1
        %s213 = scalar_lea.sflag [#allocation4], %s212
        %s214 = sand.u32 %s48, 1
        %s215 = smul.addr %s214, 8
        %s216 = scalar_lea.vmem [#allocation3], %s215
        // Predicated region
        $region33: #{tpu_custom_call.1} parent=31 // pred_check
          %p217 = pneg %p61
        $region34: #{tpu_custom_call.1} parent=31 // pred_check_branch
          %219 = sbr.rel (%p217) target = $region36
        $region35: #{tpu_custom_call.1} parent=31 // pred_region
          %220 = dma.done %s213, 128
        $region36: #{tpu_custom_call.1} parent=31 // pred_fallthru
          _
        %s221 = sand.u32 %s48, 1
        %s222 = scalar_lea.sflag [#allocation4], %s221
        %s223 = sand.u32 %s48, 1
        %s224 = smul.addr %s223, 8
        %s225 = scalar_lea.vmem [#allocation3], %s224
        %p226 = pneg %p61
        %p227 = pneg %p58
        %p228 = pneg %p82
        %p229 = pneg %p79
        %p230 = pneg %p103
        %p231 = pneg %p100
        %p232 = pneg %p131
        %p233 = pneg %p128
        %s234 = sand.u32 %s118, 1
        %s235 = scalar_lea.sflag [#allocation5], %s234
        %s236 = sand.u32 %s118, 1
        %s237 = smul.addr %s236, 8
        %s238 = scalar_lea.vmem [#allocation6], %s237
        %p239 = pneg %p159
        %p240 = pneg %p156
        %s241 = sand.u32 %s146, 1
        %s242 = scalar_lea.sflag [#allocation8], %s241
        %s243 = sand.u32 %s146, 1
        %s244 = smul.addr %s243, 2
        %s245 = scalar_lea.vmem [#allocation7], %s244
        %s246 = smul.u32 2, %s31
        %s247 = smul.u32 2, %s31
        %s248 = smul.u32 2, %s31
        %v249 = vld [vmem:[%s216] sm:$0xff]
        %v250 = vld [vmem:[%s1] sm:$0xf]
        %252 = vset.pattern.permute.xlu0 0
        %253 = vperm.xlu0 %252, %v250
        %v254 = vpop.permute.xlu0 %253
        %v256 = vunpack.c.l.s4 839922192
        %v257 = vunpack.c.0.s8 %v256
        %v258 = vlaneseq
        %v259 = vshrl.u32 %v258, 7
        %v260 = vsub.s32 %v257, %v259
        %v261 = vrot.slane %v254, %v260
        %v263 = vmul.f32 %v249, %v261
        %v265 = vcombine.high %v263, %v263
        %vm267 = vcmask 1043456
        %v268 = vsel %vm267, %v263, 0.0
        %v269 = vrot.slane %v268, 4
        %v270 = vadd.f32 %v268, %v269
        %v271 = vrot.slane %v270, 2
        %v272 = vadd.f32 %v270, %v271
        %v273 = vrot.slane %v272, 1
        %v274 = vadd.f32 %v272, %v273
        %v275 = vsel %vm267, %v265, 0.0
        %v276 = vrot.slane %v275, 4
        %v277 = vadd.f32 %v275, %v276
        %v278 = vrot.slane %v277, 2
        %v279 = vadd.f32 %v277, %v278
        %v280 = vrot.slane %v279, 1
        %v281 = vadd.f32 %v279, %v280
        %s282 = sld [smem:[#allocation2]]
        %v283 = vstv %s282
        %v284 = vadd.f32 %v274, %v283
        %v285 = vadd.f32 %v281, %v283
        %v288 = vcombine.low %v284, %v285
        %v290 = vunpack.c.l.s4 1966171168
        %v291 = vunpack.c.0.s8 %v290
        %v292 = vlaneseq
        %v293 = vshrl.u32 %v292, 7
        %v294 = vsub.s32 %v291, %v293
        %v295 = vrot.slane %v288, %v294
        %v297 = vunpack.c.l.s4 1966171168
        %v298 = vunpack.c.0.s8 %v297
        %v299 = vlaneseq
        %v300 = vshrl.u32 %v299, 7
        %v301 = vsub.s32 %v298, %v300
        %v302 = vrot.slane %v295, %v301
        %v304 = vlaneseq
        %vm305 = vcmp.ge.s32.totalorder %v304, 0
        %vm306 = vcmp.lt.s32.totalorder %v304, 256
        %vm307 = vmand %vm305, %vm306
        %308 = vst.msk [vmem:[%s245] sm:$0x3] %vm307, %v302
        %v309 = vxor.u32 %v284, 2147483648
        %v310 = vxor.u32 %v285, 2147483648
        %v311 = vmul.f32 %v309, 1.442695
        %v312 = vpow.pop %v311
        %v313 = vmul.f32 %v310, 1.442695
        %v314 = vpow.pop %v313
        %v315 = vadd.f32 %v312, 1.0
        %v316 = vadd.f32 %v314, 1.0
        %v317 = vrcp.pop %v315
        %v318 = vmul.f32 1.0, %v317
        %v319 = vrcp.pop %v316
        %v320 = vmul.f32 1.0, %v319
        %v321 = vadd.f32 %v318, 1.0
        %v322 = vadd.f32 %v320, 1.0
        %v325 = vcombine.low %v321, %v322
        %v327 = vmul.f32 %v249, %v325
        %328 = vst [vmem:[%s238] sm:$0xff] %v327
        %s329 = sand.u32 %s118, 1
        %s330 = scalar_lea.sflag [#allocation5], %s329
        %s331 = sand.u32 %s118, 1
        %s332 = smul.addr %s331, 8
        %s333 = scalar_lea.vmem [#allocation6], %s332
        %s334 = sand.u32 %s146, 1
        %s335 = scalar_lea.sflag [#allocation8], %s334
        %s336 = sand.u32 %s146, 1
        %s337 = smul.addr %s336, 2
        %s338 = scalar_lea.vmem [#allocation7], %s337
        // Predicated region
        $region37: #{tpu_custom_call.1} parent=31 // pred_check
          %p339 = pneg %p128
        $region38: #{tpu_custom_call.1} parent=31 // pred_check_branch
          %341 = sbr.rel (%p339) target = $region40
        $region39: #{tpu_custom_call.1} parent=31 // pred_region
          %s342 = smul.u32 2, %s31
          %s344 = ssub.s32 128, 128
          %345 = vsyncadd %s330, %s344
          %s346 = smul.addr %s30, 2
          %s347 = sadd.s32 %s342, %s346
          %s348 = smul.addr %s347, 64
          %s349 = scalar_lea.hbm %s3, %s348
          %s351 = sshll.u32 %s333, 4
          %s352 = int_to_ptr.vmem [resolvable:$true] %s351
          %354 = dma.vmem_to_hbm [thread:$0]  %s352, 128, %s349, %s330
        $region40: #{tpu_custom_call.1} parent=31 // pred_fallthru
          _
        // Predicated region
        $region41: #{tpu_custom_call.1} parent=31 // pred_check
          %p355 = pneg %p156
        $region42: #{tpu_custom_call.1} parent=31 // pred_check_branch
          %357 = sbr.rel (%p355) target = $region44
        $region43: #{tpu_custom_call.1} parent=31 // pred_region
          %s358 = smul.u32 2, %s31
          %s360 = ssub.s32 32, 32
          %361 = vsyncadd %s335, %s360
          %s362 = smul.addr %s30, 2
          %s363 = sadd.s32 %s358, %s362
          %s364 = smul.addr %s363, 16
          %s365 = scalar_lea.hbm %s4, %s364
          %s367 = sshll.u32 %s338, 4
          %s368 = int_to_ptr.vmem [resolvable:$true] %s367
          %370 = dma.vmem_to_hbm [thread:$0]  %s368, 32, %s365, %s335
        $region44: #{tpu_custom_call.1} parent=31 // pred_fallthru
          _
      $region32: #{tpu_custom_call.1} parent=5 // pred_fallthru
        _
      %p371 = scmp.le.s32.totalorder 2, %s21
      // Predicated region
      $region45: #{tpu_custom_call.1} parent=5 // pred_check
        %p372 = pneg %p371
      $region46: #{tpu_custom_call.1} parent=5 // pred_check_branch
        %374 = sbr.rel (%p372) target = $region48
      $region47: #{tpu_custom_call.1} parent=5 // pred_region
        %s375 = ssub.s32 %s21, 2
        // Predicated region
        $region49: #{tpu_custom_call.1} parent=47 // pred_check
          %p376 = pneg %p134
        $region50: #{tpu_custom_call.1} parent=47 // pred_check_branch
          %378 = sbr.rel (%p376) target = $region52
        $region51: #{tpu_custom_call.1} parent=47 // pred_region
          %s379 = sand.u32 %s119, 1
          %s380 = scalar_lea.sflag [#allocation5], %s379
          %s381 = sand.u32 %s119, 1
          %s382 = smul.addr %s381, 8
          %s383 = scalar_lea.vmem [#allocation6], %s382
          %384 = dma.done %s380, 128
        $region52: #{tpu_custom_call.1} parent=47 // pred_fallthru
          _
        // Predicated region
        $region53: #{tpu_custom_call.1} parent=47 // pred_check
          %p385 = pneg %p162
        $region54: #{tpu_custom_call.1} parent=47 // pred_check_branch
          %387 = sbr.rel (%p385) target = $region56
        $region55: #{tpu_custom_call.1} parent=47 // pred_region
          %s388 = sand.u32 %s147, 1
          %s389 = scalar_lea.sflag [#allocation8], %s388
          %s390 = sand.u32 %s147, 1
          %s391 = smul.addr %s390, 2
          %s392 = scalar_lea.vmem [#allocation7], %s391
          %393 = dma.done %s389, 32
        $region56: #{tpu_custom_call.1} parent=47 // pred_fallthru
          _
      $region48: #{tpu_custom_call.1} parent=5 // pred_fallthru
        _
    $region6: #{tpu_custom_call.1} parent=1 // loop_footer
      %s25 = sadd.s32 1, %s21
    $region7: #{tpu_custom_call.1} parent=1 // loop_footer_branch
      %20 = sbr.rel target = $region3
    $region8: #{tpu_custom_call.1} parent=1 // loop_exit
      _
    %394 = vsyncpa [#allocation4], 1
    %s395 = scalar_lea.sflag [#allocation4], 1
    %396 = vsyncpa %s395, 1
    %397 = vsyncpa [#allocation5], 1
    %s398 = scalar_lea.sflag [#allocation5], 1
    %399 = vsyncpa %s398, 1
    %400 = vsyncpa [#allocation8], 1
    %s401 = scalar_lea.sflag [#allocation8], 1
    %402 = vsyncpa %s401, 1

</llo_original>
